<compile_context>
chip_gen: v6e
topology: v6e:2x2x1
jax: 0.10.0
libtpu: 0.0.40
codegen_flags: <defaults>
</compile_context>

<pallas_src>
import functools
import math

import jax
import jax.numpy as jnp
from jax.experimental import pallas as pl
from jax.experimental.pallas import tpu as pltpu  # noqa: F401  (TPU-tuning hooks)


# ----------------------------- glue (plain JAX) -----------------------------

def calculate_normalized_laplacian(adj):
    """L = I - D^{-1/2} A D^{-1/2} (symmetric normalized Laplacian)."""
    adj = jnp.asarray(adj, jnp.float32)
    n = adj.shape[0]
    d = adj.sum(axis=1)
    d_inv_sqrt = jnp.where(d > 0.0, 1.0 / jnp.sqrt(d), 0.0)
    norm_adj = adj * d_inv_sqrt[None, :] * d_inv_sqrt[:, None]
    return jnp.eye(n, dtype=jnp.float32) - norm_adj


# ------------------------------ Pallas kernel -------------------------------

def _gcn_kernel(dtw_ref, base_ref, x_ref, h_ref, wx_ref, wh_ref, bias_ref,
                out_ref, *, inv_k, batch, num_nodes):
    # dtw_ref, base_ref : (N, N)      raw dtw + precomputed (eye + laplacian [+ spec])
    # x_ref             : (B*N, 1)    inputs, flattened (free bitcast in wrapper)
    # h_ref             : (B*N, U)    hidden state, flattened
    # wx_ref            : (1, O)      W[0:1]  (input-feature row of the weight matrix)
    # wh_ref            : (U, O)      W[1:]   (hidden-state rows)
    # bias_ref          : (1, O)
    # out_ref           : (B*N, O)
    #
    # dtw_norm fused in-kernel: pure VPU work, hidden under the MXU matmuls.
    dtw_n = (dtw_ref[...] + base_ref[...]) * inv_k                      # (N, N)

    # Reassociated first matmul, concat-free:
    #   tmp = concat @ W = hidden @ W[1:] + inputs[:, None] * W[0:1]
    tmp = (jnp.dot(h_ref[...], wh_ref[...],
                   preferred_element_type=jnp.float32)                  # (B*N, O) MXU
           + x_ref[...] * wx_ref[...])                                  # rank-1 VPU term

    bias = bias_ref[...]                                                # (1, O), loaded once

    # Per-batch graph mixing: out[b] = dtw_norm @ tmp[b] + bias.
    # batch is tiny and static -> unrolled at trace time; slices are 8-aligned
    # (N = 16) so they stay within sublane selection (no tile-crossing copies).
    for b in range(batch):
        rows = slice(b * num_nodes, (b + 1) * num_nodes)
        out_ref[rows, :] = (jnp.dot(dtw_n, tmp[rows, :],
                                    preferred_element_type=jnp.float32)
                            + bias)


def _gcn_pallas(dtw, base, x_col, h_flat, w_x, w_h, bias2d, inv_k,
                batch, num_nodes):
    bn, _ = h_flat.shape
    out_dim = w_h.shape[1]
    kernel = functools.partial(_gcn_kernel, inv_k=float(inv_k),
                               batch=int(batch), num_nodes=int(num_nodes))
    # grid=() : single invocation, all operands resident in VMEM (tiny problem).
    return pl.pallas_call(
        kernel,
        out_shape=jax.ShapeDtypeStruct((bn, out_dim), jnp.float32),
    )(dtw, base, x_col, h_flat, w_x, w_h, bias2d)


# ------------------------------- module port --------------------------------

class GraphConvolution:
    """JAX/Pallas port of model/DSTN.py::GraphConvolution."""

    def __init__(self, adj, num_gru_units, output_dim, bias=0.0,
                 spectrum_similarity_matrix=None, key=None):
        self._num_gru_units = int(num_gru_units)
        self._output_dim = int(output_dim)
        self._bias_init_value = float(bias)
        self.adj = jnp.asarray(adj, jnp.float32)
        self.spectrum_similarity_matrix_laplacian = calculate_normalized_laplacian(
            spectrum_similarity_matrix)
        self.laplacian = calculate_normalized_laplacian(self.adj)

        n = self.adj.shape[0]
        eye = jnp.eye(n, dtype=jnp.float32)
        # Precomputed constant parts of dtw_norm (fused with dtw inside the kernel):
        #   multi=True : (dtw + eye + laplacian + spec_laplacian) / 3
        #   multi=False: (dtw + spec_laplacian + eye) / 2
        self._base_multi = eye + self.laplacian + self.spectrum_similarity_matrix_laplacian
        self._base_single = eye + self.spectrum_similarity_matrix_laplacian

        # Deterministic xavier_uniform_ init for weights, constant for biases.
        if key is None:
            key = jax.random.PRNGKey(0)
        fan_in, fan_out = self._num_gru_units + 1, self._output_dim
        bound = math.sqrt(6.0 / (fan_in + fan_out))
        self.weights = jax.random.uniform(
            key, (fan_in, fan_out), jnp.float32, minval=-bound, maxval=bound)
        self.biases = jnp.full((self._output_dim,), self._bias_init_value,
                               dtype=jnp.float32)
        # Split weight matrix once: row 0 multiplies the inputs feature, rows 1: the hidden.
        self.w_x = self.weights[0:1, :]     # (1, O)
        self.w_h = self.weights[1:, :]      # (U, O)

    def __call__(self, inputs, hidden_state, dtw, multi):
        batch_size, num_nodes = inputs.shape
        if multi:
            base, inv_k = self._base_multi, 1.0 / 3.0
        else:
            base, inv_k = self._base_single, 1.0 / 2.0

        # Free row-major bitcasts (no data movement in XLA).
        x_col = inputs.reshape(batch_size * num_nodes, 1).astype(jnp.float32)
        h_flat = hidden_state.reshape(
            batch_size * num_nodes, self._num_gru_units).astype(jnp.float32)
        bias2d = self.biases.reshape(1, self._output_dim)

        out = _gcn_pallas(dtw.astype(jnp.float32), base, x_col, h_flat,
                          self.w_x, self.w_h, bias2d, inv_k,
                          batch_size, num_nodes)                # (B*N, O)
        # (B*N, O) -> (B, N*O): contiguous row-major reshape, free bitcast.
        return out.reshape(batch_size, num_nodes * self._output_dim)


# ---------------------------------- main -------------------------------------

if __name__ == "__main__":
    B, N, U, O = 2, 16, 32, 8   # batch, num_nodes, num_gru_units, output_dim

    key = jax.random.PRNGKey(0)
    k_adj, k_spec, k_in, k_hid, k_dtw, k_w = jax.random.split(key, 6)

    adj_raw = jax.random.uniform(k_adj, (N, N), jnp.float32)
    adj = (adj_raw + adj_raw.T) * 0.5                          # symmetric adjacency
    spec_raw = jax.random.uniform(k_spec, (N, N), jnp.float32)
    spectrum = (spec_raw + spec_raw.T) * 0.5

    inputs = jax.random.normal(k_in, (B, N), jnp.float32)
    hidden_state = jax.random.normal(k_hid, (B, N, U), jnp.float32)
    dtw_raw = jax.random.uniform(k_dtw, (N, N), jnp.float32)
    dtw = (dtw_raw + dtw_raw.T) * 0.5

    gcn = GraphConvolution(adj, U, O, bias=0.0,
                           spectrum_similarity_matrix=spectrum, key=k_w)

    eye = jnp.eye(N, dtype=jnp.float32)
    concat = jnp.concatenate((inputs[..., None], hidden_state), axis=2)

    def reference(dtw_norm):
        # Exact original (PyTorch) order: (dtw_norm @ concat) @ W + bias.
        a_times = jnp.einsum("nm,bmk->bnk", dtw_norm, concat)
        r = a_times.reshape(B * N, U + 1) @ gcn.weights + gcn.biases
        return r.reshape(B, N * O)

    ok = True

    # multi=True
    out_multi = gcn(inputs, hidden_state, dtw, multi=True)
    jax.block_until_ready(out_multi)
    ref_multi = reference((dtw + eye + gcn.laplacian
                           + gcn.spectrum_similarity_matrix_laplacian) / 3.0)
    ok &= out_multi.shape == (B, N * O)
    ok &= bool(jnp.allclose(out_multi, ref_multi, atol=1e-4, rtol=1e-4))

    # multi=False
    out_single = gcn(inputs, hidden_state, dtw, multi=False)
    jax.block_until_ready(out_single)
    ref_single = reference((dtw + gcn.spectrum_similarity_matrix_laplacian + eye) / 2.0)
    ok &= out_single.shape == (B, N * O)
    ok &= bool(jnp.allclose(out_single, ref_single, atol=1e-4, rtol=1e-4))

    assert ok
    print("KERNEL_OK")
</pallas_src>

<mosaic_0001>
module attributes {stable_mosaic.version = 11 : i64} {
  func.func @_gcn_kernel(%arg0: memref<16x16xf32, #tpu.memory_space<vmem>>, %arg1: memref<16x16xf32, #tpu.memory_space<vmem>>, %arg2: memref<32x1xf32, #tpu.memory_space<vmem>>, %arg3: memref<32x32xf32, #tpu.memory_space<vmem>>, %arg4: memref<1x8xf32, #tpu.memory_space<vmem>>, %arg5: memref<32x8xf32, #tpu.memory_space<vmem>>, %arg6: memref<1x8xf32, #tpu.memory_space<vmem>>, %arg7: memref<32x8xf32, #tpu.memory_space<vmem>>) attributes {dimension_semantics = [], scalar_prefetch = 0 : i64, scratch_operands = 0 : i64, tpu.core_type = #tpu.core_type<tc>} {
    %c0 = arith.constant 0 : index
    %c0_0 = arith.constant 0 : index
    %0 = vector.load %arg0[%c0, %c0_0] : memref<16x16xf32, #tpu.memory_space<vmem>>, vector<16x16xf32>
    %c0_1 = arith.constant 0 : index
    %c0_2 = arith.constant 0 : index
    %1 = vector.load %arg1[%c0_1, %c0_2] : memref<16x16xf32, #tpu.memory_space<vmem>>, vector<16x16xf32>
    %2 = arith.addf %0, %1 : vector<16x16xf32>
    %cst = arith.constant 0.333333343 : f32
    %3 = vector.broadcast %cst : f32 to vector<16x16xf32>
    %4 = arith.mulf %2, %3 : vector<16x16xf32>
    %c0_3 = arith.constant 0 : index
    %c0_4 = arith.constant 0 : index
    %5 = vector.load %arg3[%c0_3, %c0_4] : memref<32x32xf32, #tpu.memory_space<vmem>>, vector<32x32xf32>
    %c0_5 = arith.constant 0 : index
    %c0_6 = arith.constant 0 : index
    %6 = vector.load %arg5[%c0_5, %c0_6] : memref<32x8xf32, #tpu.memory_space<vmem>>, vector<32x8xf32>
    %cst_7 = arith.constant dense<0.000000e+00> : vector<32x8xf32>
    %7 = tpu.matmul %5, %6, %cst_7 {dimension_numbers = #tpu.dot_dimension_numbers<[1], [0], [0], [1], [0, 0, 1, 1], [], []>} : vector<32x32xf32>, vector<32x8xf32>, vector<32x8xf32> -> vector<32x8xf32>
    %c0_8 = arith.constant 0 : index
    %c0_9 = arith.constant 0 : index
    %8 = vector.load %arg2[%c0_8, %c0_9] : memref<32x1xf32, #tpu.memory_space<vmem>>, vector<32x1xf32>
    %c0_10 = arith.constant 0 : index
    %c0_11 = arith.constant 0 : index
    %9 = vector.load %arg4[%c0_10, %c0_11] : memref<1x8xf32, #tpu.memory_space<vmem>>, vector<1x8xf32>
    %10 = vector.broadcast %8 : vector<32x1xf32> to vector<32x8xf32>
    %11 = vector.broadcast %9 : vector<1x8xf32> to vector<32x8xf32>
    %12 = arith.mulf %10, %11 : vector<32x8xf32>
    %13 = arith.addf %7, %12 : vector<32x8xf32>
    %c0_12 = arith.constant 0 : index
    %c0_13 = arith.constant 0 : index
    %14 = vector.load %arg6[%c0_12, %c0_13] : memref<1x8xf32, #tpu.memory_space<vmem>>, vector<1x8xf32>
    %15 = vector.extract_strided_slice %13 {offsets = [0, 0], sizes = [16, 8], strides = [1, 1]} : vector<32x8xf32> to vector<16x8xf32>
    %cst_14 = arith.constant dense<0.000000e+00> : vector<16x8xf32>
    %16 = tpu.matmul %4, %15, %cst_14 {dimension_numbers = #tpu.dot_dimension_numbers<[1], [0], [0], [1], [0, 0, 1, 1], [], []>} : vector<16x16xf32>, vector<16x8xf32>, vector<16x8xf32> -> vector<16x8xf32>
    %17 = vector.broadcast %14 : vector<1x8xf32> to vector<16x8xf32>
    %18 = arith.addf %16, %17 : vector<16x8xf32>
    %c0_15 = arith.constant 0 : index
    %c0_16 = arith.constant 0 : index
    %19 = vector.load %arg7[%c0_15, %c0_16] : memref<32x8xf32, #tpu.memory_space<vmem>>, vector<16x8xf32>
    tpu.vector_store %arg7[%c0_15, %c0_16], %18 {strides = array<i32>} : memref<32x8xf32, #tpu.memory_space<vmem>>, vector<16x8xf32>,
    %20 = vector.extract_strided_slice %13 {offsets = [16, 0], sizes = [16, 8], strides = [1, 1]} : vector<32x8xf32> to vector<16x8xf32>
    %cst_17 = arith.constant dense<0.000000e+00> : vector<16x8xf32>
    %21 = tpu.matmul %4, %20, %cst_17 {dimension_numbers = #tpu.dot_dimension_numbers<[1], [0], [0], [1], [0, 0, 1, 1], [], []>} : vector<16x16xf32>, vector<16x8xf32>, vector<16x8xf32> -> vector<16x8xf32>
    %22 = vector.broadcast %14 : vector<1x8xf32> to vector<16x8xf32>
    %23 = arith.addf %21, %22 : vector<16x8xf32>
    %c16 = arith.constant 16 : index
    %c0_18 = arith.constant 0 : index
    %24 = vector.load %arg7[%c16, %c0_18] : memref<32x8xf32, #tpu.memory_space<vmem>>, vector<16x8xf32>
    tpu.vector_store %arg7[%c16, %c0_18], %23 {strides = array<i32>} : memref<32x8xf32, #tpu.memory_space<vmem>>, vector<16x8xf32>,
    return
  }
}

</mosaic_0001>

<llo_original>
// kernel: tpu_custom_call.1
$region0: #{tpu_custom_call.1}
  #allocation0 [shape = 'u32[]', space=smem, size = 0x4, offset = 0x4, fixed_abs, tag = 'smem constant byte address 0x4 - core index']
  #allocation1 [shape = 'u32[144,128]{1,0:T(1,128)}', space=vmem, size = 0x12000, scoped, tag = 'internal scratch']
  %s0 = inlined_call_operand.vmem [shape: f32[16,16], index: 0, kind: input, shape index: {}]
  %s1 = inlined_call_operand.vmem [shape: f32[16,16], index: 1, kind: input, shape index: {}]
  %s2 = inlined_call_operand.vmem [shape: f32[32,1], index: 2, kind: input, shape index: {}]
  %s3 = inlined_call_operand.vmem [shape: f32[32,32], index: 3, kind: input, shape index: {}]
  %s4 = inlined_call_operand.vmem [shape: f32[1,8], index: 4, kind: input, shape index: {}]
  %s5 = inlined_call_operand.vmem [shape: f32[32,8], index: 5, kind: input, shape index: {}]
  %s6 = inlined_call_operand.vmem [shape: f32[1,8], index: 6, kind: input, shape index: {}]
  %s7 = inlined_call_operand.vmem [shape: f32[32,8], index: 7, kind: output, shape index: {}]
  %s8 = sld [smem:[#allocation0]]
  $region38: #{tpu_custom_call.1} parent=0
    _
  %s10 = ssub.s32 1, %s8
  %s11 = scalar_select 0, %s10, %s8
  // Predicated region
  $region2: #{tpu_custom_call.1} parent=0 // pred_check
    _
  $region3: #{tpu_custom_call.1} parent=0 // pred_check_branch
    %13 = sbr.rel (0) target = $region5
  $region4: #{tpu_custom_call.1} parent=0 // pred_region
    _
  $region5: #{tpu_custom_call.1} parent=0 // pred_fallthru
    _
  // Predicated region
  $region6: #{tpu_custom_call.1} parent=0 // pred_check
    _
  $region7: #{tpu_custom_call.1} parent=0 // pred_check_branch
    %15 = sbr.rel (0) target = $region9
  $region8: #{tpu_custom_call.1} parent=0 // pred_region
    _
  $region9: #{tpu_custom_call.1} parent=0 // pred_fallthru
    _
  // Predicated region
  $region10: #{tpu_custom_call.1} parent=0 // pred_check
    _
  $region11: #{tpu_custom_call.1} parent=0 // pred_check_branch
    %17 = sbr.rel (0) target = $region13
  $region12: #{tpu_custom_call.1} parent=0 // pred_region
    _
  $region13: #{tpu_custom_call.1} parent=0 // pred_fallthru
    _
  // Predicated region
  $region14: #{tpu_custom_call.1} parent=0 // pred_check
    _
  $region15: #{tpu_custom_call.1} parent=0 // pred_check_branch
    %19 = sbr.rel (0) target = $region17
  $region16: #{tpu_custom_call.1} parent=0 // pred_region
    _
  $region17: #{tpu_custom_call.1} parent=0 // pred_fallthru
    _
  // Predicated region
  $region18: #{tpu_custom_call.1} parent=0 // pred_check
    _
  $region19: #{tpu_custom_call.1} parent=0 // pred_check_branch
    %21 = sbr.rel (0) target = $region21
  $region20: #{tpu_custom_call.1} parent=0 // pred_region
    _
  $region21: #{tpu_custom_call.1} parent=0 // pred_fallthru
    _
  // Predicated region
  $region22: #{tpu_custom_call.1} parent=0 // pred_check
    _
  $region23: #{tpu_custom_call.1} parent=0 // pred_check_branch
    %23 = sbr.rel (0) target = $region25
  $region24: #{tpu_custom_call.1} parent=0 // pred_region
    _
  $region25: #{tpu_custom_call.1} parent=0 // pred_fallthru
    _
  // Predicated region
  $region26: #{tpu_custom_call.1} parent=0 // pred_check
    _
  $region27: #{tpu_custom_call.1} parent=0 // pred_check_branch
    %25 = sbr.rel (0) target = $region29
  $region28: #{tpu_custom_call.1} parent=0 // pred_region
    _
  $region29: #{tpu_custom_call.1} parent=0 // pred_fallthru
    _
  %v26 = vld [vmem:[%s0] sm:$0xff]
  %v27 = vld [vmem:[%s0 + $0x8] sm:$0xff]
  %v28 = vld [vmem:[%s1] sm:$0xff]
  %v29 = vld [vmem:[%s1 + $0x8] sm:$0xff]
  %v30 = vadd.f32 %v26, %v28
  %v31 = vadd.f32 %v27, %v29
  %v32 = vmul.f32 %v30, 0.33333334
  %v33 = vmul.f32 %v31, 0.33333334
  %v34 = vld [vmem:[%s3] sm:$0xff]
  %v35 = vld [vmem:[%s3 + $0x8] sm:$0xff]
  %v36 = vld [vmem:[%s3 + $0x10] sm:$0xff]
  %v37 = vld [vmem:[%s3 + $0x18] sm:$0xff]
  %v38 = vld [vmem:[%s5] sm:$0xff]
  %v39 = vld [vmem:[%s5 + $0x8] sm:$0xff]
  %v40 = vld [vmem:[%s5 + $0x10] sm:$0xff]
  %v41 = vld [vmem:[%s5 + $0x18] sm:$0xff]
  %v42 = vld [vmem:[%s2] sm:$0xff]
  %v43 = vld [vmem:[%s2 + $0x8] sm:$0xff]
  %v44 = vld [vmem:[%s2 + $0x10] sm:$0xff]
  %v45 = vld [vmem:[%s2 + $0x18] sm:$0xff]
  %v46 = vld [vmem:[%s4] sm:$0x1]
  %48 = vset.pattern.permute.xlu0 0
  %49 = vperm.xlu0 %48, %v42
  %v50 = vpop.permute.xlu0 %49
  %53 = vset.pattern.permute.xlu0 0
  %54 = vperm.xlu0 %53, %v43
  %v55 = vpop.permute.xlu0 %54
  %58 = vset.pattern.permute.xlu0 0
  %59 = vperm.xlu0 %58, %v44
  %v60 = vpop.permute.xlu0 %59
  %63 = vset.pattern.permute.xlu0 0
  %64 = vperm.xlu0 %63, %v45
  %v65 = vpop.permute.xlu0 %64
  %v68 = vlaneseq
  %v69 = vshrl.u32 %v68, 7
  %v70 = vsub.s32 0, %v69
  %v71 = vrot.slane %v46, %v70
  %v73 = vmul.f32 %v50, %v71
  %v74 = vmul.f32 %v55, %v71
  %v75 = vmul.f32 %v60, %v71
  %v76 = vmul.f32 %v65, %v71
  %vm77 = vcmask 261120
  %v79 = vsel %vm77, %v34, 0
  %v82 = vsel %vm77, %v35, 0
  %v85 = vsel %vm77, %v36, 0
  %v88 = vsel %vm77, %v37, 0
  %90 = vmatprep.subr.mxu0 0.0
  %91 = vmatpush1.msra.mxu0 0.0
  %92 = vmatprep.subr.mxu0 0.0
  %93 = vmatpush1.msra.mxu0 0.0
  %94 = vmatprep.subr.mxu0 0.0
  %95 = vmatpush1.msra.mxu0 0.0
  %96 = vmatprep.subr.mxu0 0.0
  %97 = vmatpush1.msra.mxu0 0.0
  %98 = vmatprep.subr.mxu0 0.0
  %99 = vmatpush1.msra.mxu0 0.0
  %100 = vmatprep.subr.mxu0 0.0
  %101 = vmatpush1.msra.mxu0 0.0
  %102 = vmatprep.subr.mxu0 0.0
  %103 = vmatpush1.msra.mxu0 0.0
  %104 = vmatprep.subr.mxu0 0.0
  %105 = vmatpush1.msra.mxu0 0.0
  %106 = vmatprep.subr.mxu0 0.0
  %107 = vmatpush1.msra.mxu0 0.0
  %108 = vmatprep.subr.mxu0 0.0
  %109 = vmatpush1.msra.mxu0 0.0
  %110 = vmatprep.subr.mxu0 0.0
  %111 = vmatpush1.msra.mxu0 0.0
  %112 = vmatprep.subr.mxu0 0.0
  %113 = vmatpush1.msra.mxu0 0.0
  %114 = vmatprep.subr.mxu0 0.0
  %115 = vmatpush1.msra.mxu0 %v41
  %116 = vmatprep.subr.mxu0 0.0
  %117 = vmatpush1.msra.mxu0 %v40
  %118 = vmatprep.subr.mxu0 0.0
  %119 = vmatpush1.msra.mxu0 %v39
  %120 = vmatprep.subr.mxu0 0.0
  %121 = vmatpush1.msra.mxu0 %v38
  %122 = vmatprep.subr.mxu0 0.0
  %123 = vmatpush2.msra.mxu0 0.0
  %124 = vmatprep.subr.mxu0 0.0
  %125 = vmatpush2.msra.mxu0 0.0
  %126 = vmatprep.subr.mxu0 0.0
  %127 = vmatpush2.msra.mxu0 0.0
  %128 = vmatprep.subr.mxu0 0.0
  %129 = vmatpush2.msra.mxu0 0.0
  %130 = vmatprep.subr.mxu0 0.0
  %131 = vmatpush2.msra.mxu0 0.0
  %132 = vmatprep.subr.mxu0 0.0
  %133 = vmatpush2.msra.mxu0 0.0
  %134 = vmatprep.subr.mxu0 0.0
  %135 = vmatpush2.msra.mxu0 0.0
  %136 = vmatprep.subr.mxu0 0.0
  %137 = vmatpush2.msra.mxu0 0.0
  %138 = vmatprep.subr.mxu0 0.0
  %139 = vmatpush2.msra.mxu0 0.0
  %140 = vmatprep.subr.mxu0 0.0
  %141 = vmatpush2.msra.mxu0 0.0
  %142 = vmatprep.subr.mxu0 0.0
  %143 = vmatpush2.msra.mxu0 0.0
  %144 = vmatprep.subr.mxu0 0.0
  %145 = vmatpush2.msra.mxu0 0.0
  %146 = vmatprep.subr.mxu0 0.0
  %147 = vmatpush2.msra.mxu0 0.0
  %148 = vmatprep.subr.mxu0 0.0
  %149 = vmatpush2.msra.mxu0 0.0
  %150 = vmatprep.subr.mxu0 0.0
  %151 = vmatpush2.msra.mxu0 0.0
  %152 = vmatprep.subr.mxu0 0.0
  %153 = vmatpush2.msra.mxu0 0.0
  %154 = vmatprep.mubr.f32.mxu0 0.0
  %155 = vmatmul.mubr.f32.gmra.mxu0 %v79
  %v156 = vpop.f32.mrf.mxu0
  %v157 = vadd.f32 %v73, %v156
  %v158 = vpop.f32.mrf.mxu0
  %159 = vmatprep.mubr.f32.mxu0 0.0
  %160 = vmatmul.mubr.f32.gmra.mxu0 %v82
  %v161 = vpop.f32.mrf.mxu0
  %v162 = vadd.f32 %v74, %v161
  %v163 = vpop.f32.mrf.mxu0
  %164 = vmatprep.mubr.f32.mxu0 0.0
  %165 = vmatmul.mubr.f32.gmra.mxu0 %v85
  %v166 = vpop.f32.mrf.mxu0
  %v167 = vadd.f32 %v75, %v166
  %v168 = vpop.f32.mrf.mxu0
  %169 = vmatprep.mubr.f32.mxu0 0.0
  %170 = vmatmul.mubr.f32.gmra.mxu0 %v88
  %v171 = vpop.f32.mrf.mxu0
  %v172 = vadd.f32 %v76, %v171
  %v173 = vpop.f32.mrf.mxu0
  %174 = vdwg.mxu0
  %v175 = vld [vmem:[%s6] sm:$0x1]
  %v177 = vlaneseq
  %v178 = vshrl.u32 %v177, 7
  %v179 = vsub.s32 0, %v178
  %v180 = vrot.slane %v175, %v179
  %vm182 = vcmask 130048
  %v184 = vsel %vm182, %v32, 0
  %v187 = vsel %vm182, %v33, 0
  %189 = vmatprep.subr.mxu0 0.0
  %190 = vmatpush1.msra.mxu0 0.0
  %191 = vmatprep.subr.mxu0 0.0
  %192 = vmatpush1.msra.mxu0 0.0
  %193 = vmatprep.subr.mxu0 0.0
  %194 = vmatpush1.msra.mxu0 0.0
  %195 = vmatprep.subr.mxu0 0.0
  %196 = vmatpush1.msra.mxu0 0.0
  %197 = vmatprep.subr.mxu0 0.0
  %198 = vmatpush1.msra.mxu0 0.0
  %199 = vmatprep.subr.mxu0 0.0
  %200 = vmatpush1.msra.mxu0 0.0
  %201 = vmatprep.subr.mxu0 0.0
  %202 = vmatpush1.msra.mxu0 0.0
  %203 = vmatprep.subr.mxu0 0.0
  %204 = vmatpush1.msra.mxu0 0.0
  %205 = vmatprep.subr.mxu0 0.0
  %206 = vmatpush1.msra.mxu0 0.0
  %207 = vmatprep.subr.mxu0 0.0
  %208 = vmatpush1.msra.mxu0 0.0
  %209 = vmatprep.subr.mxu0 0.0
  %210 = vmatpush1.msra.mxu0 0.0
  %211 = vmatprep.subr.mxu0 0.0
  %212 = vmatpush1.msra.mxu0 0.0
  %213 = vmatprep.subr.mxu0 0.0
  %214 = vmatpush1.msra.mxu0 0.0
  %215 = vmatprep.subr.mxu0 0.0
  %216 = vmatpush1.msra.mxu0 0.0
  %217 = vmatprep.subr.mxu0 0.0
  %218 = vmatpush1.msra.mxu0 %v162
  %219 = vmatprep.subr.mxu0 0.0
  %220 = vmatpush1.msra.mxu0 %v157
  %221 = vmatprep.subr.mxu0 0.0
  %222 = vmatpush2.msra.mxu0 0.0
  %223 = vmatprep.subr.mxu0 0.0
  %224 = vmatpush2.msra.mxu0 0.0
  %225 = vmatprep.subr.mxu0 0.0
  %226 = vmatpush2.msra.mxu0 0.0
  %227 = vmatprep.subr.mxu0 0.0
  %228 = vmatpush2.msra.mxu0 0.0
  %229 = vmatprep.subr.mxu0 0.0
  %230 = vmatpush2.msra.mxu0 0.0
  %231 = vmatprep.subr.mxu0 0.0
  %232 = vmatpush2.msra.mxu0 0.0
  %233 = vmatprep.subr.mxu0 0.0
  %234 = vmatpush2.msra.mxu0 0.0
  %235 = vmatprep.subr.mxu0 0.0
  %236 = vmatpush2.msra.mxu0 0.0
  %237 = vmatprep.subr.mxu0 0.0
  %238 = vmatpush2.msra.mxu0 0.0
  %239 = vmatprep.subr.mxu0 0.0
  %240 = vmatpush2.msra.mxu0 0.0
  %241 = vmatprep.subr.mxu0 0.0
  %242 = vmatpush2.msra.mxu0 0.0
  %243 = vmatprep.subr.mxu0 0.0
  %244 = vmatpush2.msra.mxu0 0.0
  %245 = vmatprep.subr.mxu0 0.0
  %246 = vmatpush2.msra.mxu0 0.0
  %247 = vmatprep.subr.mxu0 0.0
  %248 = vmatpush2.msra.mxu0 0.0
  %249 = vmatprep.subr.mxu0 0.0
  %250 = vmatpush2.msra.mxu0 0.0
  %251 = vmatprep.subr.mxu0 0.0
  %252 = vmatpush2.msra.mxu0 0.0
  %253 = vmatprep.mubr.f32.mxu0 0.0
  %254 = vmatmul.mubr.f32.gmra.mxu0 %v184
  %v255 = vpop.f32.mrf.mxu0
  %v256 = vadd.f32 %v180, %v255
  %v257 = vpop.f32.mrf.mxu0
  %258 = vmatprep.mubr.f32.mxu0 0.0
  %259 = vmatmul.mubr.f32.gmra.mxu0 %v187
  %v260 = vpop.f32.mrf.mxu0
  %v261 = vadd.f32 %v180, %v260
  %v262 = vpop.f32.mrf.mxu0
  %263 = vdwg.mxu0
  %vm264 = vcmask 64512
  %265 = vst.msk [vmem:[%s7] sm:$0xff] %vm264, %v256
  %266 = vst.msk [vmem:[%s7 + $0x8] sm:$0xff] %vm264, %v261
  %267 = vmatprep.subr.mxu0 0.0
  %268 = vmatpush1.msra.mxu0 0.0
  %269 = vmatprep.subr.mxu0 0.0
  %270 = vmatpush1.msra.mxu0 0.0
  %271 = vmatprep.subr.mxu0 0.0
  %272 = vmatpush1.msra.mxu0 0.0
  %273 = vmatprep.subr.mxu0 0.0
  %274 = vmatpush1.msra.mxu0 0.0
  %275 = vmatprep.subr.mxu0 0.0
  %276 = vmatpush1.msra.mxu0 0.0
  %277 = vmatprep.subr.mxu0 0.0
  %278 = vmatpush1.msra.mxu0 0.0
  %279 = vmatprep.subr.mxu0 0.0
  %280 = vmatpush1.msra.mxu0 0.0
  %281 = vmatprep.subr.mxu0 0.0
  %282 = vmatpush1.msra.mxu0 0.0
  %283 = vmatprep.subr.mxu0 0.0
  %284 = vmatpush1.msra.mxu0 0.0
  %285 = vmatprep.subr.mxu0 0.0
  %286 = vmatpush1.msra.mxu0 0.0
  %287 = vmatprep.subr.mxu0 0.0
  %288 = vmatpush1.msra.mxu0 0.0
  %289 = vmatprep.subr.mxu0 0.0
  %290 = vmatpush1.msra.mxu0 0.0
  %291 = vmatprep.subr.mxu0 0.0
  %292 = vmatpush1.msra.mxu0 0.0
  %293 = vmatprep.subr.mxu0 0.0
  %294 = vmatpush1.msra.mxu0 0.0
  %295 = vmatprep.subr.mxu0 0.0
  %296 = vmatpush1.msra.mxu0 %v172
  %297 = vmatprep.subr.mxu0 0.0
  %298 = vmatpush1.msra.mxu0 %v167
  %299 = vmatprep.subr.mxu0 0.0
  %300 = vmatpush2.msra.mxu0 0.0
  %301 = vmatprep.subr.mxu0 0.0
  %302 = vmatpush2.msra.mxu0 0.0
  %303 = vmatprep.subr.mxu0 0.0
  %304 = vmatpush2.msra.mxu0 0.0
  %305 = vmatprep.subr.mxu0 0.0
  %306 = vmatpush2.msra.mxu0 0.0
  %307 = vmatprep.subr.mxu0 0.0
  %308 = vmatpush2.msra.mxu0 0.0
  %309 = vmatprep.subr.mxu0 0.0
  %310 = vmatpush2.msra.mxu0 0.0
  %311 = vmatprep.subr.mxu0 0.0
  %312 = vmatpush2.msra.mxu0 0.0
  %313 = vmatprep.subr.mxu0 0.0
  %314 = vmatpush2.msra.mxu0 0.0
  %315 = vmatprep.subr.mxu0 0.0
  %316 = vmatpush2.msra.mxu0 0.0
  %317 = vmatprep.subr.mxu0 0.0
  %318 = vmatpush2.msra.mxu0 0.0
  %319 = vmatprep.subr.mxu0 0.0
  %320 = vmatpush2.msra.mxu0 0.0
  %321 = vmatprep.subr.mxu0 0.0
  %322 = vmatpush2.msra.mxu0 0.0
  %323 = vmatprep.subr.mxu0 0.0
  %324 = vmatpush2.msra.mxu0 0.0
  %325 = vmatprep.subr.mxu0 0.0
  %326 = vmatpush2.msra.mxu0 0.0
  %327 = vmatprep.subr.mxu0 0.0
  %328 = vmatpush2.msra.mxu0 0.0
  %329 = vmatprep.subr.mxu0 0.0
  %330 = vmatpush2.msra.mxu0 0.0
  %331 = vmatprep.mubr.f32.mxu0 0.0
  %332 = vmatmul.mubr.f32.gmra.mxu0 %v184
  %v333 = vpop.f32.mrf.mxu0
  %v334 = vadd.f32 %v180, %v333
  %v335 = vpop.f32.mrf.mxu0
  %336 = vmatprep.mubr.f32.mxu0 0.0
  %337 = vmatmul.mubr.f32.gmra.mxu0 %v187
  %v338 = vpop.f32.mrf.mxu0
  %v339 = vadd.f32 %v180, %v338
  %v340 = vpop.f32.mrf.mxu0
  %341 = vdwg.mxu0
  %342 = vst.msk [vmem:[%s7 + $0x10] sm:$0xff] %vm264, %v334
  %343 = vst.msk [vmem:[%s7 + $0x18] sm:$0xff] %vm264, %v339
  // Predicated region
  $region30: #{tpu_custom_call.1} parent=0 // pred_check
    _
  $region31: #{tpu_custom_call.1} parent=0 // pred_check_branch
    %345 = sbr.rel (0) target = $region33
  $region32: #{tpu_custom_call.1} parent=0 // pred_region
    _
  $region33: #{tpu_custom_call.1} parent=0 // pred_fallthru
    _
  // Predicated region
  $region34: #{tpu_custom_call.1} parent=0 // pred_check
    _
  $region35: #{tpu_custom_call.1} parent=0 // pred_check_branch
    %347 = sbr.rel (0) target = $region37
  $region36: #{tpu_custom_call.1} parent=0 // pred_region
    _
  $region37: #{tpu_custom_call.1} parent=0 // pred_fallthru
    _

</llo_original>
